<compile_context>
chip_gen: v7x
topology: tpu7x:2x2x1
jax: 0.10.0
libtpu: 0.0.40
codegen_flags: <defaults>
</compile_context>

<pallas_src>
import functools

import jax
import jax.numpy as jnp
from jax.experimental import pallas as pl
from jax.experimental.pallas import tpu as pltpu


def _round_up(x: int, m: int) -> int:
    return ((x + m - 1) // m) * m


def _mlp_kernel(x_ref, w1_ref, b1_ref, w2_ref, b2_ref, o_ref):
    # Hidden layer: (TB, F) @ (F, H) -> f32 accumulate, bias + relu in f32.
    h = jnp.dot(x_ref[...], w1_ref[...], preferred_element_type=jnp.float32)
    h = jnp.maximum(h + b1_ref[...], 0.0)
    # Output layer: (TB, H) @ (H, Op) -> f32 accumulate, bias in f32.
    y = jnp.dot(h.astype(w2_ref.dtype), w2_ref[...],
                preferred_element_type=jnp.float32)
    o_ref[...] = (y + b2_ref[...]).astype(o_ref.dtype)


@functools.partial(jax.jit, static_argnames=("block_b", "compute_dtype"))
def net_forward(x, w1, b1, w2, b2, *, block_b=1024, compute_dtype=None):
    """Pallas forward pass.

    x: (B, F), w1: (F, H), b1: (H,), w2: (H, O), b2: (O,).
    compute_dtype: dtype for the matmul operands (e.g. jnp.bfloat16 on v6e/v7x);
                   accumulation, bias-add and relu stay in f32.
    """
    B, F = x.shape
    H = w1.shape[1]
    O = w2.shape[1]
    out_dtype = x.dtype
    if compute_dtype is None:
        compute_dtype = x.dtype

    # ---- Padding for TPU-friendly tiling -------------------------------------
    # Output columns padded to a multiple of 128 -> lane-dense, unmasked stores.
    Op = _round_up(O, 128)
    # Batch tile: multiple of 8 sublanes, capped by block_b; batch padded to a
    # multiple of the tile so the grid divides evenly.
    TB = min(_round_up(B, 8), _round_up(block_b, 8))
    Bp = _round_up(B, TB)

    x_p = x if Bp == B else jnp.pad(x, ((0, Bp - B), (0, 0)))
    w2_p = w2 if Op == O else jnp.pad(w2, ((0, 0), (0, Op - O)))
    b2_p = b2 if Op == O else jnp.pad(b2, (0, Op - O))

    x_p = x_p.astype(compute_dtype)
    w1_c = w1.astype(compute_dtype)
    w2_p = w2_p.astype(compute_dtype)
    b1_2d = b1.reshape(1, H).astype(jnp.float32)   # epilogue stays f32
    b2_2d = b2_p.reshape(1, Op).astype(jnp.float32)

    grid = (Bp // TB,)

    out = pl.pallas_call(
        _mlp_kernel,
        out_shape=jax.ShapeDtypeStruct((Bp, Op), out_dtype),
        grid_spec=pltpu.PrefetchScalarGridSpec(
            num_scalar_prefetch=0,
            grid=grid,
            in_specs=[
                # X: tiled along batch, pipelined.
                pl.BlockSpec((TB, F), lambda i: (i, 0)),
                # Weights/biases: constant index_map -> stay resident in VMEM.
                pl.BlockSpec((F, H), lambda i: (0, 0)),
                pl.BlockSpec((1, H), lambda i: (0, 0)),
                pl.BlockSpec((H, Op), lambda i: (0, 0)),
                pl.BlockSpec((1, Op), lambda i: (0, 0)),
            ],
            out_specs=pl.BlockSpec((TB, Op), lambda i: (i, 0)),
        ),
        compiler_params=pltpu.CompilerParams(
            dimension_semantics=("parallel",),  # megacore sharding on v7x
        ),
    )(x_p, w1_c, b1_2d, w2_p, b2_2d)

    # Strip batch and output-column padding.
    return out[:B, :O]


def init_params(key, n_features, n_hidden, n_output):
    """Deterministic init mirroring torch.nn.Linear's U(-1/sqrt(fan_in), 1/sqrt(fan_in))."""
    k1, k2, k3, k4 = jax.random.split(key, 4)
    lim1 = 1.0 / jnp.sqrt(jnp.float32(n_features))
    lim2 = 1.0 / jnp.sqrt(jnp.float32(n_hidden))
    w1 = jax.random.uniform(k1, (n_features, n_hidden), jnp.float32, -lim1, lim1)
    b1 = jax.random.uniform(k2, (n_hidden,), jnp.float32, -lim1, lim1)
    w2 = jax.random.uniform(k3, (n_hidden, n_output), jnp.float32, -lim2, lim2)
    b2 = jax.random.uniform(k4, (n_output,), jnp.float32, -lim2, lim2)
    return w1, b1, w2, b2


def _reference(x, w1, b1, w2, b2):
    h = jnp.maximum(x @ w1 + b1, 0.0)
    return h @ w2 + b2


if __name__ == "__main__":
    n_features, n_hidden, n_output = 4, 32, 1

    key = jax.random.PRNGKey(0)
    k_x1, k_x2, k_p = jax.random.split(key, 3)
    w1, b1, w2, b2 = init_params(k_p, n_features, n_hidden, n_output)

    # Small batch (single grid step).
    x_small = jax.random.normal(k_x1, (8, n_features), jnp.float32)
    y_small = net_forward(x_small, w1, b1, w2, b2)
    jax.block_until_ready(y_small)
    assert y_small.shape == (8, n_output)
    assert jnp.allclose(y_small, _reference(x_small, w1, b1, w2, b2),
                        atol=1e-5, rtol=1e-5)

    # Larger / non-multiple batch: exercises the batch grid + padding path.
    x_big = jax.random.normal(k_x2, (300, n_features), jnp.float32)
    y_big = net_forward(x_big, w1, b1, w2, b2, block_b=128)
    jax.block_until_ready(y_big)
    assert y_big.shape == (300, n_output)
    assert jnp.allclose(y_big, _reference(x_big, w1, b1, w2, b2),
                        atol=1e-5, rtol=1e-5)

    print("KERNEL_OK")
</pallas_src>

<mosaic_0001>
module attributes {stable_mosaic.version = 11 : i64} {
  func.func @_mlp_kernel(%arg0: i32, %arg1: memref<8x4xf32, #tpu.memory_space<vmem>>, %arg2: memref<4x32xf32, #tpu.memory_space<vmem>>, %arg3: memref<1x32xf32, #tpu.memory_space<vmem>>, %arg4: memref<32x128xf32, #tpu.memory_space<vmem>>, %arg5: memref<1x128xf32, #tpu.memory_space<vmem>>, %arg6: memref<8x128xf32, #tpu.memory_space<vmem>>) attributes {dimension_semantics = [#tpu.dimension_semantics<parallel>], iteration_bounds = array<i64: 1>, scalar_prefetch = 0 : i64, scratch_operands = 0 : i64, tpu.core_type = #tpu.core_type<tc>, window_params = [{transform_indices = @transform_0, window_bounds = array<i64: 8, 4>}, {pipeline_mode = #tpu.pipeline_mode<synchronous>, transform_indices = @transform_1, window_bounds = array<i64: 4, 32>}, {pipeline_mode = #tpu.pipeline_mode<synchronous>, transform_indices = @transform_2, window_bounds = array<i64: 1, 32>}, {pipeline_mode = #tpu.pipeline_mode<synchronous>, transform_indices = @transform_3, window_bounds = array<i64: 32, 128>}, {pipeline_mode = #tpu.pipeline_mode<synchronous>, transform_indices = @transform_4, window_bounds = array<i64: 1, 128>}, {transform_indices = @transform_5, window_bounds = array<i64: 8, 128>}]} {
    %c0 = arith.constant 0 : index
    %c0_0 = arith.constant 0 : index
    %0 = vector.load %arg1[%c0, %c0_0] : memref<8x4xf32, #tpu.memory_space<vmem>>, vector<8x4xf32>
    %c0_1 = arith.constant 0 : index
    %c0_2 = arith.constant 0 : index
    %1 = vector.load %arg2[%c0_1, %c0_2] : memref<4x32xf32, #tpu.memory_space<vmem>>, vector<4x32xf32>
    %cst = arith.constant dense<0.000000e+00> : vector<8x32xf32>
    %2 = tpu.matmul %0, %1, %cst {dimension_numbers = #tpu.dot_dimension_numbers<[1], [0], [0], [1], [0, 0, 1, 1], [], []>} : vector<8x4xf32>, vector<4x32xf32>, vector<8x32xf32> -> vector<8x32xf32>
    %c0_3 = arith.constant 0 : index
    %c0_4 = arith.constant 0 : index
    %3 = vector.load %arg3[%c0_3, %c0_4] : memref<1x32xf32, #tpu.memory_space<vmem>>, vector<1x32xf32>
    %4 = vector.broadcast %3 : vector<1x32xf32> to vector<8x32xf32>
    %5 = arith.addf %2, %4 : vector<8x32xf32>
    %cst_5 = arith.constant 0.000000e+00 : f32
    %6 = vector.broadcast %cst_5 : f32 to vector<8x32xf32>
    %7 = arith.maximumf %5, %6 : vector<8x32xf32>
    %c0_6 = arith.constant 0 : index
    %c0_7 = arith.constant 0 : index
    %8 = vector.load %arg4[%c0_6, %c0_7] : memref<32x128xf32, #tpu.memory_space<vmem>>, vector<32x128xf32>
    %cst_8 = arith.constant dense<0.000000e+00> : vector<8x128xf32>
    %9 = tpu.matmul %7, %8, %cst_8 {dimension_numbers = #tpu.dot_dimension_numbers<[1], [0], [0], [1], [0, 0, 1, 1], [], []>} : vector<8x32xf32>, vector<32x128xf32>, vector<8x128xf32> -> vector<8x128xf32>
    %c0_9 = arith.constant 0 : index
    %c0_10 = arith.constant 0 : index
    %10 = vector.load %arg5[%c0_9, %c0_10] : memref<1x128xf32, #tpu.memory_space<vmem>>, vector<1x128xf32>
    %11 = vector.broadcast %10 : vector<1x128xf32> to vector<8x128xf32>
    %12 = arith.addf %9, %11 : vector<8x128xf32>
    %c0_11 = arith.constant 0 : index
    %c0_12 = arith.constant 0 : index
    %13 = vector.load %arg6[%c0_11, %c0_12] : memref<8x128xf32, #tpu.memory_space<vmem>>, vector<8x128xf32>
    tpu.vector_store %arg6[%c0_11, %c0_12], %12 {strides = array<i32>} : memref<8x128xf32, #tpu.memory_space<vmem>>, vector<8x128xf32>,
    return
  }
  func.func @transform_0(%arg0: i32) -> (i32, i32) {
    %c0_i32 = arith.constant 0 : i32
    %c0_i32_0 = arith.constant 0 : i32
    return %arg0, %c0_i32 : i32, i32
  }
  func.func @transform_1(%arg0: i32) -> (i32, i32) {
    %c0_i32 = arith.constant 0 : i32
    %c0_i32_0 = arith.constant 0 : i32
    %c0_i32_1 = arith.constant 0 : i32
    return %c0_i32, %c0_i32_0 : i32, i32
  }
  func.func @transform_2(%arg0: i32) -> (i32, i32) {
    %c0_i32 = arith.constant 0 : i32
    %c0_i32_0 = arith.constant 0 : i32
    %c0_i32_1 = arith.constant 0 : i32
    return %c0_i32, %c0_i32_0 : i32, i32
  }
  func.func @transform_3(%arg0: i32) -> (i32, i32) {
    %c0_i32 = arith.constant 0 : i32
    %c0_i32_0 = arith.constant 0 : i32
    %c0_i32_1 = arith.constant 0 : i32
    return %c0_i32, %c0_i32_0 : i32, i32
  }
  func.func @transform_4(%arg0: i32) -> (i32, i32) {
    %c0_i32 = arith.constant 0 : i32
    %c0_i32_0 = arith.constant 0 : i32
    %c0_i32_1 = arith.constant 0 : i32
    return %c0_i32, %c0_i32_0 : i32, i32
  }
  func.func @transform_5(%arg0: i32) -> (i32, i32) {
    %c0_i32 = arith.constant 0 : i32
    %c0_i32_0 = arith.constant 0 : i32
    return %arg0, %c0_i32 : i32, i32
  }
}

</mosaic_0001>

<llo_original>
// kernel: net_forward.1
$region0: #{net_forward.1}
  #allocation0 [shape = 'u32[]', space=smem, size = 0x4, offset = 0x4, fixed_abs, tag = 'smem constant byte address 0x4 - core index']
  #allocation1 [shape = 'u32[144,128]{1,0:T(1,128)}', space=vmem, size = 0x12000, scoped, tag = 'internal scratch']
  %s0 = inlined_call_operand.vmem [shape: f32[8,4], index: 0, kind: input, shape index: {}]
  %s1 = inlined_call_operand.vmem [shape: f32[4,32], index: 1, kind: input, shape index: {}]
  %s2 = inlined_call_operand.vmem [shape: f32[1,32], index: 2, kind: input, shape index: {}]
  %s3 = inlined_call_operand.vmem [shape: f32[32,128], index: 3, kind: input, shape index: {}]
  %s4 = inlined_call_operand.vmem [shape: f32[1,128], index: 4, kind: input, shape index: {}]
  %s5 = inlined_call_operand.vmem [shape: f32[8,128], index: 5, kind: output, shape index: {}]
  %s6 = sld [smem:[#allocation0]]
  $region30: #{net_forward.1} parent=0
    _
  %s8 = ssub.s32 1, %s6
  %s9 = scalar_select 0, %s8, %s6
  // Predicated region
  $region2: #{net_forward.1} parent=0 // pred_check
    _
  $region3: #{net_forward.1} parent=0 // pred_check_branch
    %11 = sbr.rel (0) target = $region5
  $region4: #{net_forward.1} parent=0 // pred_region
    _
  $region5: #{net_forward.1} parent=0 // pred_fallthru
    _
  // Predicated region
  $region6: #{net_forward.1} parent=0 // pred_check
    _
  $region7: #{net_forward.1} parent=0 // pred_check_branch
    %13 = sbr.rel (0) target = $region9
  $region8: #{net_forward.1} parent=0 // pred_region
    _
  $region9: #{net_forward.1} parent=0 // pred_fallthru
    _
  // Predicated region
  $region10: #{net_forward.1} parent=0 // pred_check
    _
  $region11: #{net_forward.1} parent=0 // pred_check_branch
    %15 = sbr.rel (0) target = $region13
  $region12: #{net_forward.1} parent=0 // pred_region
    _
  $region13: #{net_forward.1} parent=0 // pred_fallthru
    _
  // Predicated region
  $region14: #{net_forward.1} parent=0 // pred_check
    _
  $region15: #{net_forward.1} parent=0 // pred_check_branch
    %17 = sbr.rel (0) target = $region17
  $region16: #{net_forward.1} parent=0 // pred_region
    _
  $region17: #{net_forward.1} parent=0 // pred_fallthru
    _
  // Predicated region
  $region18: #{net_forward.1} parent=0 // pred_check
    _
  $region19: #{net_forward.1} parent=0 // pred_check_branch
    %19 = sbr.rel (0) target = $region21
  $region20: #{net_forward.1} parent=0 // pred_region
    _
  $region21: #{net_forward.1} parent=0 // pred_fallthru
    _
  %v20 = vld [vmem:[%s0] sm:$0xff]
  %v21 = vld [vmem:[%s1] sm:$0xf]
  %v22 = vld [vmem:[%s2] sm:$0x1]
  %v24 = vlaneseq
  %v25 = vshrl.u32 %v24, 7
  %v26 = vsub.s32 0, %v25
  %v27 = vrot.slane %v22, %v26
  %vm29 = vcmask 31744
  %v31 = vsel %vm29, %v20, 0
  %vm33 = vcmask 1043456
  %v35 = vsel %vm33, %v21, 0
  %37 = vmatprep.subr.mxu0 0.0
  %38 = vmatpush1.msra.mxu0 %v35
  %39 = vmatprep.subr.mxu0 0.0
  %40 = vmatpush1.msra.mxu0 0.0
  %41 = vmatprep.subr.mxu0 0.0
  %42 = vmatpush1.msra.mxu0 0.0
  %43 = vmatprep.subr.mxu0 0.0
  %44 = vmatpush1.msra.mxu0 0.0
  %45 = vmatprep.subr.mxu0 0.0
  %46 = vmatpush1.msra.mxu0 0.0
  %47 = vmatprep.subr.mxu0 0.0
  %48 = vmatpush1.msra.mxu0 0.0
  %49 = vmatprep.subr.mxu0 0.0
  %50 = vmatpush1.msra.mxu0 0.0
  %51 = vmatprep.subr.mxu0 0.0
  %52 = vmatpush1.msra.mxu0 0.0
  %53 = vmatprep.subr.mxu0 0.0
  %54 = vmatpush1.msra.mxu0 0.0
  %55 = vmatprep.subr.mxu0 0.0
  %56 = vmatpush1.msra.mxu0 0.0
  %57 = vmatprep.subr.mxu0 0.0
  %58 = vmatpush1.msra.mxu0 0.0
  %59 = vmatprep.subr.mxu0 0.0
  %60 = vmatpush1.msra.mxu0 0.0
  %61 = vmatprep.subr.mxu0 0.0
  %62 = vmatpush1.msra.mxu0 0.0
  %63 = vmatprep.subr.mxu0 0.0
  %64 = vmatpush1.msra.mxu0 0.0
  %65 = vmatprep.subr.mxu0 0.0
  %66 = vmatpush1.msra.mxu0 0.0
  %67 = vmatprep.subr.mxu0 0.0
  %68 = vmatpush1.msra.mxu0 0.0
  %69 = vmatprep.subr.mxu0 0.0
  %70 = vmatpush1.msra.mxu0 0.0
  %71 = vmatprep.subr.mxu0 0.0
  %72 = vmatpush1.msra.mxu0 0.0
  %73 = vmatprep.subr.mxu0 0.0
  %74 = vmatpush1.msra.mxu0 0.0
  %75 = vmatprep.subr.mxu0 0.0
  %76 = vmatpush1.msra.mxu0 0.0
  %77 = vmatprep.subr.mxu0 0.0
  %78 = vmatpush1.msra.mxu0 0.0
  %79 = vmatprep.subr.mxu0 0.0
  %80 = vmatpush1.msra.mxu0 0.0
  %81 = vmatprep.subr.mxu0 0.0
  %82 = vmatpush1.msra.mxu0 0.0
  %83 = vmatprep.subr.mxu0 0.0
  %84 = vmatpush1.msra.mxu0 0.0
  %85 = vmatprep.subr.mxu0 0.0
  %86 = vmatpush1.msra.mxu0 0.0
  %87 = vmatprep.subr.mxu0 0.0
  %88 = vmatpush1.msra.mxu0 0.0
  %89 = vmatprep.subr.mxu0 0.0
  %90 = vmatpush1.msra.mxu0 0.0
  %91 = vmatprep.subr.mxu0 0.0
  %92 = vmatpush1.msra.mxu0 0.0
  %93 = vmatprep.subr.mxu0 0.0
  %94 = vmatpush1.msra.mxu0 0.0
  %95 = vmatprep.subr.mxu0 0.0
  %96 = vmatpush1.msra.mxu0 0.0
  %97 = vmatprep.subr.mxu0 0.0
  %98 = vmatpush1.msra.mxu0 0.0
  %99 = vmatprep.subr.mxu0 0.0
  %100 = vmatpush1.msra.mxu0 0.0
  %101 = vmatprep.mubr.f32.mxu0 0.0
  %102 = vmatmul.mubr.f32.gmra.mrb[0].mxu0 %v31
  %v103 = vpop.f32.mrb[0].mxu0
  %v104 = vadd.f32 %v27, %v103
  %v105 = vpop.f32.mrb[0].mxu0
  %106 = vdwg.mxu0
  %v107 = vmax.f32 %v104, 0.0
  %v108 = vld [vmem:[%s3] sm:$0xff]
  %v109 = vld [vmem:[%s3 + $0x8] sm:$0xff]
  %v110 = vld [vmem:[%s3 + $0x10] sm:$0xff]
  %v111 = vld [vmem:[%s3 + $0x18] sm:$0xff]
  %v112 = vld [vmem:[%s4] sm:$0x1]
  %v114 = vlaneseq
  %v115 = vshrl.u32 %v114, 7
  %v116 = vsub.s32 0, %v115
  %v117 = vrot.slane %v112, %v116
  %vm119 = vcmask 261120
  %v121 = vsel %vm119, %v107, 0
  %123 = vmatprep.subr.mxu0 0.0
  %124 = vmatpush1.msra.mxu0 %v108
  %125 = vmatprep.subr.mxu0 0.0
  %126 = vmatpush1.msra.mxu0 %v109
  %127 = vmatprep.subr.mxu0 0.0
  %128 = vmatpush1.msra.mxu0 %v110
  %129 = vmatprep.subr.mxu0 0.0
  %130 = vmatpush1.msra.mxu0 %v111
  %131 = vmatprep.subr.mxu0 0.0
  %132 = vmatpush1.msra.mxu0 0.0
  %133 = vmatprep.subr.mxu0 0.0
  %134 = vmatpush1.msra.mxu0 0.0
  %135 = vmatprep.subr.mxu0 0.0
  %136 = vmatpush1.msra.mxu0 0.0
  %137 = vmatprep.subr.mxu0 0.0
  %138 = vmatpush1.msra.mxu0 0.0
  %139 = vmatprep.subr.mxu0 0.0
  %140 = vmatpush1.msra.mxu0 0.0
  %141 = vmatprep.subr.mxu0 0.0
  %142 = vmatpush1.msra.mxu0 0.0
  %143 = vmatprep.subr.mxu0 0.0
  %144 = vmatpush1.msra.mxu0 0.0
  %145 = vmatprep.subr.mxu0 0.0
  %146 = vmatpush1.msra.mxu0 0.0
  %147 = vmatprep.subr.mxu0 0.0
  %148 = vmatpush1.msra.mxu0 0.0
  %149 = vmatprep.subr.mxu0 0.0
  %150 = vmatpush1.msra.mxu0 0.0
  %151 = vmatprep.subr.mxu0 0.0
  %152 = vmatpush1.msra.mxu0 0.0
  %153 = vmatprep.subr.mxu0 0.0
  %154 = vmatpush1.msra.mxu0 0.0
  %155 = vmatprep.subr.mxu0 0.0
  %156 = vmatpush1.msra.mxu0 0.0
  %157 = vmatprep.subr.mxu0 0.0
  %158 = vmatpush1.msra.mxu0 0.0
  %159 = vmatprep.subr.mxu0 0.0
  %160 = vmatpush1.msra.mxu0 0.0
  %161 = vmatprep.subr.mxu0 0.0
  %162 = vmatpush1.msra.mxu0 0.0
  %163 = vmatprep.subr.mxu0 0.0
  %164 = vmatpush1.msra.mxu0 0.0
  %165 = vmatprep.subr.mxu0 0.0
  %166 = vmatpush1.msra.mxu0 0.0
  %167 = vmatprep.subr.mxu0 0.0
  %168 = vmatpush1.msra.mxu0 0.0
  %169 = vmatprep.subr.mxu0 0.0
  %170 = vmatpush1.msra.mxu0 0.0
  %171 = vmatprep.subr.mxu0 0.0
  %172 = vmatpush1.msra.mxu0 0.0
  %173 = vmatprep.subr.mxu0 0.0
  %174 = vmatpush1.msra.mxu0 0.0
  %175 = vmatprep.subr.mxu0 0.0
  %176 = vmatpush1.msra.mxu0 0.0
  %177 = vmatprep.subr.mxu0 0.0
  %178 = vmatpush1.msra.mxu0 0.0
  %179 = vmatprep.subr.mxu0 0.0
  %180 = vmatpush1.msra.mxu0 0.0
  %181 = vmatprep.subr.mxu0 0.0
  %182 = vmatpush1.msra.mxu0 0.0
  %183 = vmatprep.subr.mxu0 0.0
  %184 = vmatpush1.msra.mxu0 0.0
  %185 = vmatprep.subr.mxu0 0.0
  %186 = vmatpush1.msra.mxu0 0.0
  %187 = vmatprep.mubr.f32.mxu0 0.0
  %188 = vmatmul.mubr.f32.gmra.mrb[0].mxu0 %v121
  %v189 = vpop.f32.mrb[0].mxu0
  %v190 = vadd.f32 %v117, %v189
  %v191 = vpop.f32.mrb[0].mxu0
  %192 = vdwg.mxu0
  %193 = vst [vmem:[%s5] sm:$0xff] %v190
  // Predicated region
  $region22: #{net_forward.1} parent=0 // pred_check
    _
  $region23: #{net_forward.1} parent=0 // pred_check_branch
    %195 = sbr.rel (0) target = $region25
  $region24: #{net_forward.1} parent=0 // pred_region
    _
  $region25: #{net_forward.1} parent=0 // pred_fallthru
    _
  // Predicated region
  $region26: #{net_forward.1} parent=0 // pred_check
    _
  $region27: #{net_forward.1} parent=0 // pred_check_branch
    %197 = sbr.rel (0) target = $region29
  $region28: #{net_forward.1} parent=0 // pred_region
    _
  $region29: #{net_forward.1} parent=0 // pred_fallthru
    _

</llo_original>
